<compile_context>
chip_gen: v6e
topology: v6e:2x2x1
jax: 0.10.0
libtpu: 0.0.40
codegen_flags: <defaults>
</compile_context>

<pallas_src>
import functools

import numpy as np

import jax
import jax.numpy as jnp
from jax.experimental import pallas as pl
from jax.experimental.pallas import tpu as pltpu

_LANE = 128
_BF16_SUBLANE = 16            # bf16 packs 16 rows per sublane group
_VMEM_TARGET_BYTES = 40 << 20  # keep the planned footprint v7x-safe (64 MiB/TC)


def _round_up(x, m):
    return ((x + m - 1) // m) * m


def _cdiv(a, b):
    return (a + b - 1) // b


# --------------------------------------------------------------------------
# Kernel
# --------------------------------------------------------------------------
def _make_encoder_kernel(num_layers):
    """Fused MLP kernel. Ref order: (x, w_0, b_0, ..., w_{L-1}, b_{L-1}, out)."""

    def kernel(*refs):
        x_ref, o_ref = refs[0], refs[-1]
        wb = refs[1:-1]
        h = x_ref[...]                                   # bf16 activations
        for l in range(num_layers):
            w_ref, b_ref = wb[2 * l], wb[2 * l + 1]
            # bf16 MXU matmul with f32 accumulation.
            acc = jnp.dot(h, w_ref[...], preferred_element_type=jnp.float32)
            acc = acc + b_ref[...]                       # bias (1, N) broadcast, f32
            if l < num_layers - 1:
                # ReLU + inter-layer cast in bf16 (bf16 VALU on v6e/v7x).
                h = jnp.maximum(acc.astype(jnp.bfloat16), 0)
                # (Dropout: identity in eval mode.)
            else:
                h = acc
        o_ref[...] = h.astype(o_ref.dtype)

    return kernel


# --------------------------------------------------------------------------
# Param preparation (eager, once): lane-pad widths, cast dtypes.
# --------------------------------------------------------------------------
def prepare_encoder_params(params):
    """params: tuple of (W, b) with W as (in, out) (PyTorch (out,in) pre-T),
    b as (1, out) or (out,). Returns lane-padded bf16 W / f32 b pairs."""
    prepared = []
    prev_pad = None
    for (w, b) in params:
        in_dim, out_dim = w.shape
        in_tgt = in_dim if prev_pad is None else prev_pad   # match prev padded width
        out_tgt = _round_up(out_dim, _LANE)
        w_p = jnp.pad(w.astype(jnp.bfloat16),
                      ((0, in_tgt - in_dim), (0, out_tgt - out_dim)))
        b_p = jnp.pad(jnp.reshape(b, (1, -1)).astype(jnp.float32),
                      ((0, 0), (0, out_tgt - out_dim)))
        prepared.append((w_p, b_p))
        prev_pad = out_tgt
    return tuple(prepared)


def _vmem_footprint_bytes(block_b, feat_dim, layer_out_dims, out_itemsize,
                          weight_buffers):
    """Estimate of the kernel's VMEM footprint for a given batch tile."""
    total = 0
    in_dim = feat_dim
    for d in layer_out_dims:
        total += in_dim * d * 2 * weight_buffers         # W, bf16
        total += d * 4 * weight_buffers                  # b, f32
        in_dim = d
    total += 2 * block_b * feat_dim * 2                  # x, bf16, double-buffered
    total += 2 * block_b * layer_out_dims[-1] * out_itemsize  # out, double-buffered
    total += block_b * max(layer_out_dims) * (4 + 2)     # f32 acc + bf16 activation
    return total


# --------------------------------------------------------------------------
# Forward
# --------------------------------------------------------------------------
@functools.partial(
    jax.jit,
    static_argnames=("out_dim", "block_b", "single_buffer_weights", "out_dtype"))
def _encoder_forward_impl(x, params, *, out_dim, block_b, single_buffer_weights,
                          out_dtype):
    B, F = x.shape
    num_layers = len(params)
    layer_out_dims = [w.shape[1] for w, _ in params]     # already lane-padded
    out_pad = layer_out_dims[-1]
    out_itemsize = np.dtype(out_dtype).itemsize
    wbuf = 1 if single_buffer_weights else 2

    # --- batch tiling -------------------------------------------------------
    # Minimal pad to a multiple of 16 rows (bf16 sublane packing); any further
    # raggedness of the last tile is handled by Pallas (garbage rows discarded).
    b_used = _round_up(B, _BF16_SUBLANE)
    block_b_eff = max(_BF16_SUBLANE, min(block_b, b_used))
    if b_used >= 512:
        # Keep >=2 grid steps so the "parallel" batch axis can shard across
        # both TensorCores on v7x (extra step is ~0.35us on single-TC chips).
        block_b_eff = min(block_b_eff, _round_up(_cdiv(b_used, 2), 256))
    # Shrink the tile if the planned footprint would blow the VMEM target.
    while (block_b_eff > 64 and
           _vmem_footprint_bytes(block_b_eff, F, layer_out_dims, out_itemsize,
                                 wbuf) > _VMEM_TARGET_BYTES):
        block_b_eff = max(64, block_b_eff // 2)

    footprint = _vmem_footprint_bytes(block_b_eff, F, layer_out_dims,
                                      out_itemsize, wbuf)
    vmem_limit = min(max(int(footprint * 1.3) + (2 << 20), 32 << 20), 100 << 20)

    # --- inputs -------------------------------------------------------------
    x_p = x
    if b_used != B:
        x_p = jnp.pad(x_p, ((0, b_used - B), (0, 0)))    # <=15 rows, fused with cast
    x_p = x_p.astype(jnp.bfloat16)

    def _const_spec(shape):
        if single_buffer_weights:
            return pl.BlockSpec(shape, lambda i: (0, 0),
                                pipeline_mode=pl.Buffered(1))
        return pl.BlockSpec(shape, lambda i: (0, 0))

    flat_args = []
    in_specs = [pl.BlockSpec((block_b_eff, F), lambda i: (i, 0))]
    for (w, b) in params:
        flat_args.append(w)
        flat_args.append(b)
        in_specs.append(_const_spec(w.shape))
        in_specs.append(_const_spec(b.shape))

    grid = (pl.cdiv(b_used, block_b_eff),)

    out = pl.pallas_call(
        _make_encoder_kernel(num_layers),
        out_shape=jax.ShapeDtypeStruct((b_used, out_pad), out_dtype),
        grid_spec=pltpu.PrefetchScalarGridSpec(
            num_scalar_prefetch=0,
            grid=grid,
            in_specs=in_specs,
            out_specs=pl.BlockSpec((block_b_eff, out_pad), lambda i: (i, 0)),
        ),
        compiler_params=pltpu.CompilerParams(
            dimension_semantics=("parallel",),
            vmem_limit_bytes=vmem_limit),
    )(x_p, *flat_args)

    return out[:B, :out_dim]


def encoder_forward(x, params, *, block_b=512, out_dtype=None):
    """x: [B, input_dim] -> [B, out_dim] (eval-mode Encoder forward)."""
    out_dim = params[-1][0].shape[1]
    prepared = prepare_encoder_params(params)
    out_dtype = x.dtype if out_dtype is None else out_dtype
    try:
        return _encoder_forward_impl(
            x, prepared, out_dim=out_dim, block_b=block_b,
            single_buffer_weights=True, out_dtype=out_dtype)
    except Exception:
        # Fallback if pipeline_mode=pl.Buffered(1) is unsupported on this jax
        # version: default (double-buffered) resident weights.
        return _encoder_forward_impl(
            x, prepared, out_dim=out_dim, block_b=block_b,
            single_buffer_weights=False, out_dtype=out_dtype)


# --------------------------------------------------------------------------
# Reference + demo
# --------------------------------------------------------------------------
def _init_linear(key, in_dim, out_dim, dtype=jnp.float32):
    """Deterministic init; W as (in, out), b as (1, out)."""
    kw, kb = jax.random.split(key)
    bound = 1.0 / jnp.sqrt(in_dim)
    w = jax.random.uniform(kw, (in_dim, out_dim), dtype, -bound, bound)
    b = jax.random.uniform(kb, (1, out_dim), dtype, -bound, bound)
    return w, b


def _reference_forward(x, params):
    """Plain-JAX reference with the same bf16-in / f32-accumulate recipe."""
    n = len(params)
    h = x.astype(jnp.bfloat16)
    for i, (w, b) in enumerate(params):
        acc = jnp.dot(h, w.astype(jnp.bfloat16),
                      preferred_element_type=jnp.float32)
        acc = acc + b.astype(jnp.float32)
        if i < n - 1:
            h = jnp.maximum(acc.astype(jnp.bfloat16), 0)
        else:
            h = acc
    return h.astype(x.dtype)


if __name__ == "__main__":
    # Encoder(input_dim=32, out_dim=16, hidden_sizes=[64, 32]) at batch=8.
    input_dim, out_dim = 32, 16
    hidden_sizes = [64, 32]
    batch = 8

    key = jax.random.PRNGKey(0)
    kx, k1, k2, k3 = jax.random.split(key, 4)

    x = jax.random.normal(kx, (batch, input_dim), jnp.float32)
    dims = [input_dim] + hidden_sizes + [out_dim]
    params = tuple(
        _init_linear(k, din, dout)
        for k, din, dout in zip((k1, k2, k3), dims[:-1], dims[1:])
    )

    out = encoder_forward(x, params)
    out = jax.block_until_ready(out)

    ref = _reference_forward(x, params)
    assert out.shape == (batch, out_dim)
    assert jnp.allclose(out, ref, atol=1e-3, rtol=1e-3), "mismatch vs JAX reference"

    print("KERNEL_OK")
</pallas_src>

<mosaic_0001>
module attributes {stable_mosaic.version = 11 : i64} {
  func.func @kernel(%arg0: i32, %arg1: memref<16x32xbf16, #tpu.memory_space<vmem>>, %arg2: memref<32x128xbf16, #tpu.memory_space<vmem>>, %arg3: memref<1x128xf32, #tpu.memory_space<vmem>>, %arg4: memref<128x128xbf16, #tpu.memory_space<vmem>>, %arg5: memref<1x128xf32, #tpu.memory_space<vmem>>, %arg6: memref<128x128xbf16, #tpu.memory_space<vmem>>, %arg7: memref<1x128xf32, #tpu.memory_space<vmem>>, %arg8: memref<16x128xf32, #tpu.memory_space<vmem>>) attributes {dimension_semantics = [#tpu.dimension_semantics<parallel>], iteration_bounds = array<i64: 1>, scalar_prefetch = 0 : i64, scratch_operands = 0 : i64, tpu.core_type = #tpu.core_type<tc>, window_params = [{transform_indices = @transform_0, window_bounds = array<i64: 16, 32>}, {pipeline_mode = #tpu.pipeline_mode<synchronous>, transform_indices = @transform_1, window_bounds = array<i64: 32, 128>}, {pipeline_mode = #tpu.pipeline_mode<synchronous>, transform_indices = @transform_2, window_bounds = array<i64: 1, 128>}, {pipeline_mode = #tpu.pipeline_mode<synchronous>, transform_indices = @transform_3, window_bounds = array<i64: 128, 128>}, {pipeline_mode = #tpu.pipeline_mode<synchronous>, transform_indices = @transform_4, window_bounds = array<i64: 1, 128>}, {pipeline_mode = #tpu.pipeline_mode<synchronous>, transform_indices = @transform_5, window_bounds = array<i64: 128, 128>}, {pipeline_mode = #tpu.pipeline_mode<synchronous>, transform_indices = @transform_6, window_bounds = array<i64: 1, 128>}, {transform_indices = @transform_7, window_bounds = array<i64: 16, 128>}]} {
    %c0 = arith.constant 0 : index
    %c0_0 = arith.constant 0 : index
    %0 = vector.load %arg1[%c0, %c0_0] : memref<16x32xbf16, #tpu.memory_space<vmem>>, vector<16x32xbf16>
    %c0_1 = arith.constant 0 : index
    %c0_2 = arith.constant 0 : index
    %1 = vector.load %arg2[%c0_1, %c0_2] : memref<32x128xbf16, #tpu.memory_space<vmem>>, vector<32x128xbf16>
    %cst = arith.constant dense<0.000000e+00> : vector<16x128xf32>
    %2 = tpu.matmul %0, %1, %cst {dimension_numbers = #tpu.dot_dimension_numbers<[1], [0], [0], [1], [0, 0, 1, 1], [], []>} : vector<16x32xbf16>, vector<32x128xbf16>, vector<16x128xf32> -> vector<16x128xf32>
    %c0_3 = arith.constant 0 : index
    %c0_4 = arith.constant 0 : index
    %3 = vector.load %arg3[%c0_3, %c0_4] : memref<1x128xf32, #tpu.memory_space<vmem>>, vector<1x128xf32>
    %4 = vector.broadcast %3 : vector<1x128xf32> to vector<16x128xf32>
    %5 = arith.addf %2, %4 : vector<16x128xf32>
    %6 = arith.truncf %5 : vector<16x128xf32> to vector<16x128xbf16>
    %cst_5 = arith.constant 0.000000e+00 : bf16
    %7 = vector.broadcast %cst_5 : bf16 to vector<16x128xbf16>
    %8 = arith.maximumf %6, %7 : vector<16x128xbf16>
    %c0_6 = arith.constant 0 : index
    %c0_7 = arith.constant 0 : index
    %9 = vector.load %arg4[%c0_6, %c0_7] : memref<128x128xbf16, #tpu.memory_space<vmem>>, vector<128x128xbf16>
    %cst_8 = arith.constant dense<0.000000e+00> : vector<16x128xf32>
    %10 = tpu.matmul %8, %9, %cst_8 {dimension_numbers = #tpu.dot_dimension_numbers<[1], [0], [0], [1], [0, 0, 1, 1], [], []>} : vector<16x128xbf16>, vector<128x128xbf16>, vector<16x128xf32> -> vector<16x128xf32>
    %c0_9 = arith.constant 0 : index
    %c0_10 = arith.constant 0 : index
    %11 = vector.load %arg5[%c0_9, %c0_10] : memref<1x128xf32, #tpu.memory_space<vmem>>, vector<1x128xf32>
    %12 = vector.broadcast %11 : vector<1x128xf32> to vector<16x128xf32>
    %13 = arith.addf %10, %12 : vector<16x128xf32>
    %14 = arith.truncf %13 : vector<16x128xf32> to vector<16x128xbf16>
    %cst_11 = arith.constant 0.000000e+00 : bf16
    %15 = vector.broadcast %cst_11 : bf16 to vector<16x128xbf16>
    %16 = arith.maximumf %14, %15 : vector<16x128xbf16>
    %c0_12 = arith.constant 0 : index
    %c0_13 = arith.constant 0 : index
    %17 = vector.load %arg6[%c0_12, %c0_13] : memref<128x128xbf16, #tpu.memory_space<vmem>>, vector<128x128xbf16>
    %cst_14 = arith.constant dense<0.000000e+00> : vector<16x128xf32>
    %18 = tpu.matmul %16, %17, %cst_14 {dimension_numbers = #tpu.dot_dimension_numbers<[1], [0], [0], [1], [0, 0, 1, 1], [], []>} : vector<16x128xbf16>, vector<128x128xbf16>, vector<16x128xf32> -> vector<16x128xf32>
    %c0_15 = arith.constant 0 : index
    %c0_16 = arith.constant 0 : index
    %19 = vector.load %arg7[%c0_15, %c0_16] : memref<1x128xf32, #tpu.memory_space<vmem>>, vector<1x128xf32>
    %20 = vector.broadcast %19 : vector<1x128xf32> to vector<16x128xf32>
    %21 = arith.addf %18, %20 : vector<16x128xf32>
    %c0_17 = arith.constant 0 : index
    %c0_18 = arith.constant 0 : index
    %22 = vector.load %arg8[%c0_17, %c0_18] : memref<16x128xf32, #tpu.memory_space<vmem>>, vector<16x128xf32>
    tpu.vector_store %arg8[%c0_17, %c0_18], %21 {strides = array<i32>} : memref<16x128xf32, #tpu.memory_space<vmem>>, vector<16x128xf32>,
    return
  }
  func.func @transform_0(%arg0: i32) -> (i32, i32) {
    %c0_i32 = arith.constant 0 : i32
    %c0_i32_0 = arith.constant 0 : i32
    return %arg0, %c0_i32 : i32, i32
  }
  func.func @transform_1(%arg0: i32) -> (i32, i32) {
    %c0_i32 = arith.constant 0 : i32
    %c0_i32_0 = arith.constant 0 : i32
    %c0_i32_1 = arith.constant 0 : i32
    return %c0_i32, %c0_i32_0 : i32, i32
  }
  func.func @transform_2(%arg0: i32) -> (i32, i32) {
    %c0_i32 = arith.constant 0 : i32
    %c0_i32_0 = arith.constant 0 : i32
    %c0_i32_1 = arith.constant 0 : i32
    return %c0_i32, %c0_i32_0 : i32, i32
  }
  func.func @transform_3(%arg0: i32) -> (i32, i32) {
    %c0_i32 = arith.constant 0 : i32
    %c0_i32_0 = arith.constant 0 : i32
    %c0_i32_1 = arith.constant 0 : i32
    return %c0_i32, %c0_i32_0 : i32, i32
  }
  func.func @transform_4(%arg0: i32) -> (i32, i32) {
    %c0_i32 = arith.constant 0 : i32
    %c0_i32_0 = arith.constant 0 : i32
    %c0_i32_1 = arith.constant 0 : i32
    return %c0_i32, %c0_i32_0 : i32, i32
  }
  func.func @transform_5(%arg0: i32) -> (i32, i32) {
    %c0_i32 = arith.constant 0 : i32
    %c0_i32_0 = arith.constant 0 : i32
    %c0_i32_1 = arith.constant 0 : i32
    return %c0_i32, %c0_i32_0 : i32, i32
  }
  func.func @transform_6(%arg0: i32) -> (i32, i32) {
    %c0_i32 = arith.constant 0 : i32
    %c0_i32_0 = arith.constant 0 : i32
    %c0_i32_1 = arith.constant 0 : i32
    return %c0_i32, %c0_i32_0 : i32, i32
  }
  func.func @transform_7(%arg0: i32) -> (i32, i32) {
    %c0_i32 = arith.constant 0 : i32
    %c0_i32_0 = arith.constant 0 : i32
    return %arg0, %c0_i32 : i32, i32
  }
}

module attributes {stable_mosaic.version = 11 : i64} {
  func.func @kernel(%arg0: i32, %arg1: memref<16x32xbf16, #tpu.memory_space<vmem>>, %arg2: memref<32x128xbf16, #tpu.memory_space<vmem>>, %arg3: memref<1x128xf32, #tpu.memory_space<vmem>>, %arg4: memref<128x128xbf16, #tpu.memory_space<vmem>>, %arg5: memref<1x128xf32, #tpu.memory_space<vmem>>, %arg6: memref<128x128xbf16, #tpu.memory_space<vmem>>, %arg7: memref<1x128xf32, #tpu.memory_space<vmem>>, %arg8: memref<16x128xf32, #tpu.memory_space<vmem>>) attributes {dimension_semantics = [#tpu.dimension_semantics<parallel>], iteration_bounds = array<i64: 1>, scalar_prefetch = 0 : i64, scratch_operands = 0 : i64, tpu.core_type = #tpu.core_type<tc>, window_params = [{transform_indices = @transform_0, window_bounds = array<i64: 16, 32>}, {pipeline_mode = #tpu.pipeline_mode<synchronous>, transform_indices = @transform_1, window_bounds = array<i64: 32, 128>}, {pipeline_mode = #tpu.pipeline_mode<synchronous>, transform_indices = @transform_2, window_bounds = array<i64: 1, 128>}, {pipeline_mode = #tpu.pipeline_mode<synchronous>, transform_indices = @transform_3, window_bounds = array<i64: 128, 128>}, {pipeline_mode = #tpu.pipeline_mode<synchronous>, transform_indices = @transform_4, window_bounds = array<i64: 1, 128>}, {pipeline_mode = #tpu.pipeline_mode<synchronous>, transform_indices = @transform_5, window_bounds = array<i64: 128, 128>}, {pipeline_mode = #tpu.pipeline_mode<synchronous>, transform_indices = @transform_6, window_bounds = array<i64: 1, 128>}, {transform_indices = @transform_7, window_bounds = array<i64: 16, 128>}]} {
    %c0 = arith.constant 0 : index
    %c0_0 = arith.constant 0 : index
    %0 = vector.load %arg1[%c0, %c0_0] : memref<16x32xbf16, #tpu.memory_space<vmem>>, vector<16x32xbf16>
    %c0_1 = arith.constant 0 : index
    %c0_2 = arith.constant 0 : index
    %1 = vector.load %arg2[%c0_1, %c0_2] : memref<32x128xbf16, #tpu.memory_space<vmem>>, vector<32x128xbf16>
    %cst = arith.constant dense<0.000000e+00> : vector<16x128xf32>
    %2 = tpu.matmul %0, %1, %cst {dimension_numbers = #tpu.dot_dimension_numbers<[1], [0], [0], [1], [0, 0, 1, 1], [], []>} : vector<16x32xbf16>, vector<32x128xbf16>, vector<16x128xf32> -> vector<16x128xf32>
    %c0_3 = arith.constant 0 : index
    %c0_4 = arith.constant 0 : index
    %3 = vector.load %arg3[%c0_3, %c0_4] : memref<1x128xf32, #tpu.memory_space<vmem>>, vector<1x128xf32>
    %4 = vector.broadcast %3 : vector<1x128xf32> to vector<16x128xf32>
    %5 = arith.addf %2, %4 : vector<16x128xf32>
    %6 = arith.truncf %5 : vector<16x128xf32> to vector<16x128xbf16>
    %cst_5 = arith.constant 0.000000e+00 : bf16
    %7 = vector.broadcast %cst_5 : bf16 to vector<16x128xbf16>
    %8 = arith.maximumf %6, %7 : vector<16x128xbf16>
    %c0_6 = arith.constant 0 : index
    %c0_7 = arith.constant 0 : index
    %9 = vector.load %arg4[%c0_6, %c0_7] : memref<128x128xbf16, #tpu.memory_space<vmem>>, vector<128x128xbf16>
    %cst_8 = arith.constant dense<0.000000e+00> : vector<16x128xf32>
    %10 = tpu.matmul %8, %9, %cst_8 {dimension_numbers = #tpu.dot_dimension_numbers<[1], [0], [0], [1], [0, 0, 1, 1], [], []>} : vector<16x128xbf16>, vector<128x128xbf16>, vector<16x128xf32> -> vector<16x128xf32>
    %c0_9 = arith.constant 0 : index
    %c0_10 = arith.constant 0 : index
    %11 = vector.load %arg5[%c0_9, %c0_10] : memref<1x128xf32, #tpu.memory_space<vmem>>, vector<1x128xf32>
    %12 = vector.broadcast %11 : vector<1x128xf32> to vector<16x128xf32>
    %13 = arith.addf %10, %12 : vector<16x128xf32>
    %14 = arith.truncf %13 : vector<16x128xf32> to vector<16x128xbf16>
    %cst_11 = arith.constant 0.000000e+00 : bf16
    %15 = vector.broadcast %cst_11 : bf16 to vector<16x128xbf16>
    %16 = arith.maximumf %14, %15 : vector<16x128xbf16>
    %c0_12 = arith.constant 0 : index
    %c0_13 = arith.constant 0 : index
    %17 = vector.load %arg6[%c0_12, %c0_13] : memref<128x128xbf16, #tpu.memory_space<vmem>>, vector<128x128xbf16>
    %cst_14 = arith.constant dense<0.000000e+00> : vector<16x128xf32>
    %18 = tpu.matmul %16, %17, %cst_14 {dimension_numbers = #tpu.dot_dimension_numbers<[1], [0], [0], [1], [0, 0, 1, 1], [], []>} : vector<16x128xbf16>, vector<128x128xbf16>, vector<16x128xf32> -> vector<16x128xf32>
    %c0_15 = arith.constant 0 : index
    %c0_16 = arith.constant 0 : index
    %19 = vector.load %arg7[%c0_15, %c0_16] : memref<1x128xf32, #tpu.memory_space<vmem>>, vector<1x128xf32>
    %20 = vector.broadcast %19 : vector<1x128xf32> to vector<16x128xf32>
    %21 = arith.addf %18, %20 : vector<16x128xf32>
    %c0_17 = arith.constant 0 : index
    %c0_18 = arith.constant 0 : index
    %22 = vector.load %arg8[%c0_17, %c0_18] : memref<16x128xf32, #tpu.memory_space<vmem>>, vector<16x128xf32>
    tpu.vector_store %arg8[%c0_17, %c0_18], %21 {strides = array<i32>} : memref<16x128xf32, #tpu.memory_space<vmem>>, vector<16x128xf32>,
    return
  }
  func.func @transform_0(%arg0: i32) -> (i32, i32) {
    %c0_i32 = arith.constant 0 : i32
    %c0_i32_0 = arith.constant 0 : i32
    return %arg0, %c0_i32 : i32, i32
  }
  func.func @transform_1(%arg0: i32) -> (i32, i32) {
    %c0_i32 = arith.constant 0 : i32
    %c0_i32_0 = arith.constant 0 : i32
    %c0_i32_1 = arith.constant 0 : i32
    return %c0_i32, %c0_i32_0 : i32, i32
  }
  func.func @transform_2(%arg0: i32) -> (i32, i32) {
    %c0_i32 = arith.constant 0 : i32
    %c0_i32_0 = arith.constant 0 : i32
    %c0_i32_1 = arith.constant 0 : i32
    return %c0_i32, %c0_i32_0 : i32, i32
  }
  func.func @transform_3(%arg0: i32) -> (i32, i32) {
    %c0_i32 = arith.constant 0 : i32
    %c0_i32_0 = arith.constant 0 : i32
    %c0_i32_1 = arith.constant 0 : i32
    return %c0_i32, %c0_i32_0 : i32, i32
  }
  func.func @transform_4(%arg0: i32) -> (i32, i32) {
    %c0_i32 = arith.constant 0 : i32
    %c0_i32_0 = arith.constant 0 : i32
    %c0_i32_1 = arith.constant 0 : i32
    return %c0_i32, %c0_i32_0 : i32, i32
  }
  func.func @transform_5(%arg0: i32) -> (i32, i32) {
    %c0_i32 = arith.constant 0 : i32
    %c0_i32_0 = arith.constant 0 : i32
    %c0_i32_1 = arith.constant 0 : i32
    return %c0_i32, %c0_i32_0 : i32, i32
  }
  func.func @transform_6(%arg0: i32) -> (i32, i32) {
    %c0_i32 = arith.constant 0 : i32
    %c0_i32_0 = arith.constant 0 : i32
    %c0_i32_1 = arith.constant 0 : i32
    return %c0_i32, %c0_i32_0 : i32, i32
  }
  func.func @transform_7(%arg0: i32) -> (i32, i32) {
    %c0_i32 = arith.constant 0 : i32
    %c0_i32_0 = arith.constant 0 : i32
    return %arg0, %c0_i32 : i32, i32
  }
}

</mosaic_0001>

<llo_original>
// kernel: _encoder_forward_impl.1
$region0: #{_encoder_forward_impl.1}
  #allocation0 [shape = 'u32[]', space=smem, size = 0x4, offset = 0x4, fixed_abs, tag = 'smem constant byte address 0x4 - core index']
  #allocation1 [shape = 'u32[144,128]{1,0:T(1,128)}', space=vmem, size = 0x12000, scoped, tag = 'internal scratch']
  %s0 = inlined_call_operand.vmem [shape: bf16[16,32], index: 0, kind: input, shape index: {}]
  %s1 = inlined_call_operand.vmem [shape: bf16[32,128], index: 1, kind: input, shape index: {}]
  %s2 = inlined_call_operand.vmem [shape: f32[1,128], index: 2, kind: input, shape index: {}]
  %s3 = inlined_call_operand.hbm [shape: bf16[128,128], index: 3, kind: input, shape index: {}]
  %s4 = inlined_call_operand.vmem [shape: f32[1,128], index: 4, kind: input, shape index: {}]
  %s5 = inlined_call_operand.hbm [shape: bf16[128,128], index: 5, kind: input, shape index: {}]
  %s6 = inlined_call_operand.vmem [shape: f32[1,128], index: 6, kind: input, shape index: {}]
  %s7 = inlined_call_operand.vmem [shape: f32[16,128], index: 7, kind: output, shape index: {}]
  %s8 = sld [smem:[#allocation0]]
  $region46: #{_encoder_forward_impl.1} parent=0
    _
  %s10 = ssub.s32 1, %s8
  %s11 = scalar_select 0, %s10, %s8
  $region1: #{_encoder_forward_impl.1} parent=0
    #allocation2 [shape = 'u8[32768]{0}', space=vmem, size = 0x8000, scoped, tag = 'input window, operand 3, single buffered']
    #allocation3 [shape = 's32[1]{0}', space=sflag, size = 0x4, scoped, tag = 'scoped memory for _encoder_forward_impl.1']
    #allocation4 [shape = 'u8[32768]{0}', space=vmem, size = 0x8000, scoped, tag = 'input window, operand 5, single buffered']
    #allocation5 [shape = 's32[1]{0}', space=sflag, size = 0x4, scoped, tag = 'scoped memory for _encoder_forward_impl.1']
    %12 = vsyncpa [#allocation3], 0
    %13 = vsyncpa [#allocation5], 0
    // Predicated region
    $region2: #{_encoder_forward_impl.1} parent=1 // pred_check
      _
    $region3: #{_encoder_forward_impl.1} parent=1 // pred_check_branch
      %15 = sbr.rel (0) target = $region5
    $region4: #{_encoder_forward_impl.1} parent=1 // pred_region
      _
    $region5: #{_encoder_forward_impl.1} parent=1 // pred_fallthru
      _
    // Predicated region
    $region6: #{_encoder_forward_impl.1} parent=1 // pred_check
      _
    $region7: #{_encoder_forward_impl.1} parent=1 // pred_check_branch
      %17 = sbr.rel (0) target = $region9
    $region8: #{_encoder_forward_impl.1} parent=1 // pred_region
      _
    $region9: #{_encoder_forward_impl.1} parent=1 // pred_fallthru
      _
    // Predicated region
    $region10: #{_encoder_forward_impl.1} parent=1 // pred_check
      _
    $region11: #{_encoder_forward_impl.1} parent=1 // pred_check_branch
      %19 = sbr.rel (0) target = $region13
    $region12: #{_encoder_forward_impl.1} parent=1 // pred_region
      _
    $region13: #{_encoder_forward_impl.1} parent=1 // pred_fallthru
      _
    // Predicated region
    $region14: #{_encoder_forward_impl.1} parent=1 // pred_check
      _
    $region15: #{_encoder_forward_impl.1} parent=1 // pred_check_branch
      %21 = sbr.rel (0) target = $region17
    $region16: #{_encoder_forward_impl.1} parent=1 // pred_region
      %s23 = ssub.s32 1024, 1024
      %24 = vsyncadd [#allocation3], %s23
      %s25 = sshll.u32 [#allocation2], 4
      %s26 = int_to_ptr.vmem [resolvable:$true] %s25
      %31 = dma.hbm_to_vmem [thread:$0]  %s3, 1024, %s26, [#allocation3], 64, 64, 4
    $region17: #{_encoder_forward_impl.1} parent=1 // pred_fallthru
      _
    // Predicated region
    $region18: #{_encoder_forward_impl.1} parent=1 // pred_check
      _
    $region19: #{_encoder_forward_impl.1} parent=1 // pred_check_branch
      %33 = sbr.rel (0) target = $region21
    $region20: #{_encoder_forward_impl.1} parent=1 // pred_region
      _
    $region21: #{_encoder_forward_impl.1} parent=1 // pred_fallthru
      _
    // Predicated region
    $region22: #{_encoder_forward_impl.1} parent=1 // pred_check
      _
    $region23: #{_encoder_forward_impl.1} parent=1 // pred_check_branch
      %35 = sbr.rel (0) target = $region25
    $region24: #{_encoder_forward_impl.1} parent=1 // pred_region
      %s37 = ssub.s32 1024, 1024
      %38 = vsyncadd [#allocation5], %s37
      %s39 = sshll.u32 [#allocation4], 4
      %s40 = int_to_ptr.vmem [resolvable:$true] %s39
      %45 = dma.hbm_to_vmem [thread:$0]  %s5, 1024, %s40, [#allocation5], 64, 64, 4
    $region25: #{_encoder_forward_impl.1} parent=1 // pred_fallthru
      _
    // Predicated region
    $region26: #{_encoder_forward_impl.1} parent=1 // pred_check
      _
    $region27: #{_encoder_forward_impl.1} parent=1 // pred_check_branch
      %47 = sbr.rel (0) target = $region29
    $region28: #{_encoder_forward_impl.1} parent=1 // pred_region
      _
    $region29: #{_encoder_forward_impl.1} parent=1 // pred_fallthru
      _
    // Predicated region
    $region30: #{_encoder_forward_impl.1} parent=1 // pred_check
      _
    $region31: #{_encoder_forward_impl.1} parent=1 // pred_check_branch
      %49 = sbr.rel (0) target = $region33
    $region32: #{_encoder_forward_impl.1} parent=1 // pred_region
      %50 = dma.done [#allocation3], 1024
    $region33: #{_encoder_forward_impl.1} parent=1 // pred_fallthru
      _
    // Predicated region
    $region34: #{_encoder_forward_impl.1} parent=1 // pred_check
      _
    $region35: #{_encoder_forward_impl.1} parent=1 // pred_check_branch
      %52 = sbr.rel (0) target = $region37
    $region36: #{_encoder_forward_impl.1} parent=1 // pred_region
      %53 = dma.done [#allocation5], 1024
    $region37: #{_encoder_forward_impl.1} parent=1 // pred_fallthru
      _
    %v55 = vld [vmem:[%s0] sm:$0xf]
    %v56 = vld [vmem:[%s0 + $0x4] sm:$0xf]
    %v57 = vld [vmem:[%s1] sm:$0xf]
    %v58 = vld [vmem:[%s1 + $0x4] sm:$0xf]
    %v59 = vld [vmem:[%s1 + $0x8] sm:$0xf]
    %v60 = vld [vmem:[%s1 + $0xc] sm:$0xf]
    %v61 = vld [vmem:[%s2] sm:$0x1]
    %v63 = vlaneseq
    %v64 = vshrl.u32 %v63, 7
    %v65 = vsub.s32 0, %v64
    %v66 = vrot.slane %v61, %v65
    %v70 = vunpack.c.l.b16 %v55
    %v71 = vunpack.c.l.b16 %v56
    %v72 = vpack.c.b16 %v71, %v70
    %v77 = vunpack.c.l.b16 %v57
    %v78 = vunpack.c.l.b16 %v58
    %v79 = vunpack.c.l.b16 %v59
    %v80 = vunpack.c.l.b16 %v60
    %v81 = vpack.c.b16 %v78, %v77
    %v82 = vpack.c.b16 %v80, %v79
    %vm85 = vcmask 261120
    %v87 = vsel %vm85, %v72, 0
    %89 = vmatprep.subr.bf16.mxu0 0
    %90 = vmatpush1.bf16.msra.mxu0 0
    %91 = vmatprep.subr.bf16.mxu0 0
    %92 = vmatpush1.bf16.msra.mxu0 0
    %93 = vmatprep.subr.bf16.mxu0 0
    %94 = vmatpush1.bf16.msra.mxu0 0
    %95 = vmatprep.subr.bf16.mxu0 0
    %96 = vmatpush1.bf16.msra.mxu0 0
    %97 = vmatprep.subr.bf16.mxu0 0
    %98 = vmatpush1.bf16.msra.mxu0 0
    %99 = vmatprep.subr.bf16.mxu0 0
    %100 = vmatpush1.bf16.msra.mxu0 0
    %101 = vmatprep.subr.bf16.mxu0 0
    %102 = vmatpush1.bf16.msra.mxu0 %v82
    %103 = vmatprep.subr.bf16.mxu0 0
    %104 = vmatpush1.bf16.msra.mxu0 %v81
    %105 = vmatprep.subr.bf16.mxu0 0
    %106 = vmatpush2.bf16.msra.mxu0 0
    %107 = vmatprep.subr.bf16.mxu0 0
    %108 = vmatpush2.bf16.msra.mxu0 0
    %109 = vmatprep.subr.bf16.mxu0 0
    %110 = vmatpush2.bf16.msra.mxu0 0
    %111 = vmatprep.subr.bf16.mxu0 0
    %112 = vmatpush2.bf16.msra.mxu0 0
    %113 = vmatprep.subr.bf16.mxu0 0
    %114 = vmatpush2.bf16.msra.mxu0 0
    %115 = vmatprep.subr.bf16.mxu0 0
    %116 = vmatpush2.bf16.msra.mxu0 0
    %117 = vmatprep.subr.bf16.mxu0 0
    %118 = vmatpush2.bf16.msra.mxu0 0
    %119 = vmatprep.subr.bf16.mxu0 0
    %120 = vmatpush2.bf16.msra.mxu0 0
    %121 = vmatprep.mubr.bf16.mxu0 0
    %122 = vmatmul.mubr.bf16.gmra.mxu0 %v87
    %v123 = vpop.f32.mrf.mxu0
    %v124 = vadd.f32 %v66, %v123
    %v125 = vpop.f32.mrf.mxu0
    %v126 = vpop.f32.mrf.mxu0
    %v127 = vadd.f32 %v66, %v126
    %v128 = vpop.f32.mrf.mxu0
    %129 = vdwg.mxu0
    %v130 = vpack.c.bf16 %v127, %v124
    %v131 = vmax.bf16 %v130, 0
    %v132 = vld [vmem:[#allocation2] sm:$0xf]
    %v133 = vld [vmem:[#allocation2 + $0x4] sm:$0xf]
    %v134 = vld [vmem:[#allocation2 + $0x8] sm:$0xf]
    %v135 = vld [vmem:[#allocation2 + $0xc] sm:$0xf]
    %v136 = vld [vmem:[#allocation2 + $0x10] sm:$0xf]
    %v137 = vld [vmem:[#allocation2 + $0x14] sm:$0xf]
    %v138 = vld [vmem:[#allocation2 + $0x18] sm:$0xf]
    %v139 = vld [vmem:[#allocation2 + $0x1c] sm:$0xf]
    %v140 = vld [vmem:[#allocation2 + $0x20] sm:$0xf]
    %v141 = vld [vmem:[#allocation2 + $0x24] sm:$0xf]
    %v142 = vld [vmem:[#allocation2 + $0x28] sm:$0xf]
    %v143 = vld [vmem:[#allocation2 + $0x2c] sm:$0xf]
    %v144 = vld [vmem:[#allocation2 + $0x30] sm:$0xf]
    %v145 = vld [vmem:[#allocation2 + $0x34] sm:$0xf]
    %v146 = vld [vmem:[#allocation2 + $0x38] sm:$0xf]
    %v147 = vld [vmem:[#allocation2 + $0x3c] sm:$0xf]
    %v148 = vld [vmem:[%s4] sm:$0x1]
    %v150 = vlaneseq
    %v151 = vshrl.u32 %v150, 7
    %v152 = vsub.s32 0, %v151
    %v153 = vrot.slane %v148, %v152
    %v171 = vunpack.c.l.b16 %v132
    %v172 = vunpack.c.l.b16 %v133
    %v173 = vunpack.c.l.b16 %v134
    %v174 = vunpack.c.l.b16 %v135
    %v175 = vunpack.c.l.b16 %v136
    %v176 = vunpack.c.l.b16 %v137
    %v177 = vunpack.c.l.b16 %v138
    %v178 = vunpack.c.l.b16 %v139
    %v179 = vunpack.c.l.b16 %v140
    %v180 = vunpack.c.l.b16 %v141
    %v181 = vunpack.c.l.b16 %v142
    %v182 = vunpack.c.l.b16 %v143
    %v183 = vunpack.c.l.b16 %v144
    %v184 = vunpack.c.l.b16 %v145
    %v185 = vunpack.c.l.b16 %v146
    %v186 = vunpack.c.l.b16 %v147
    %v187 = vpack.c.b16 %v172, %v171
    %v188 = vpack.c.b16 %v174, %v173
    %v189 = vpack.c.b16 %v176, %v175
    %v190 = vpack.c.b16 %v178, %v177
    %v191 = vpack.c.b16 %v180, %v179
    %v192 = vpack.c.b16 %v182, %v181
    %v193 = vpack.c.b16 %v184, %v183
    %v194 = vpack.c.b16 %v186, %v185
    %203 = vmatprep.subr.bf16.mxu0 0
    %204 = vmatpush1.bf16.msra.mxu0 %v194
    %205 = vmatprep.subr.bf16.mxu0 0
    %206 = vmatpush1.bf16.msra.mxu0 %v193
    %207 = vmatprep.subr.bf16.mxu0 0
    %208 = vmatpush1.bf16.msra.mxu0 %v192
    %209 = vmatprep.subr.bf16.mxu0 0
    %210 = vmatpush1.bf16.msra.mxu0 %v191
    %211 = vmatprep.subr.bf16.mxu0 0
    %212 = vmatpush1.bf16.msra.mxu0 %v190
    %213 = vmatprep.subr.bf16.mxu0 0
    %214 = vmatpush1.bf16.msra.mxu0 %v189
    %215 = vmatprep.subr.bf16.mxu0 0
    %216 = vmatpush1.bf16.msra.mxu0 %v188
    %217 = vmatprep.subr.bf16.mxu0 0
    %218 = vmatpush1.bf16.msra.mxu0 %v187
    %219 = vmatprep.subr.bf16.mxu0 0
    %220 = vmatpush2.bf16.msra.mxu0 0
    %221 = vmatprep.subr.bf16.mxu0 0
    %222 = vmatpush2.bf16.msra.mxu0 0
    %223 = vmatprep.subr.bf16.mxu0 0
    %224 = vmatpush2.bf16.msra.mxu0 0
    %225 = vmatprep.subr.bf16.mxu0 0
    %226 = vmatpush2.bf16.msra.mxu0 0
    %227 = vmatprep.subr.bf16.mxu0 0
    %228 = vmatpush2.bf16.msra.mxu0 0
    %229 = vmatprep.subr.bf16.mxu0 0
    %230 = vmatpush2.bf16.msra.mxu0 0
    %231 = vmatprep.subr.bf16.mxu0 0
    %232 = vmatpush2.bf16.msra.mxu0 0
    %233 = vmatprep.subr.bf16.mxu0 0
    %234 = vmatpush2.bf16.msra.mxu0 0
    %235 = vmatprep.mubr.bf16.mxu0 0
    %236 = vmatmul.mubr.bf16.gmra.mxu0 %v131
    %v237 = vpop.f32.mrf.mxu0
    %v238 = vadd.f32 %v153, %v237
    %v239 = vpop.f32.mrf.mxu0
    %v240 = vpop.f32.mrf.mxu0
    %v241 = vadd.f32 %v153, %v240
    %v242 = vpop.f32.mrf.mxu0
    %243 = vdwg.mxu0
    %v244 = vpack.c.bf16 %v241, %v238
    %v245 = vmax.bf16 %v244, 0
    %v246 = vld [vmem:[#allocation4] sm:$0xf]
    %v247 = vld [vmem:[#allocation4 + $0x4] sm:$0xf]
    %v248 = vld [vmem:[#allocation4 + $0x8] sm:$0xf]
    %v249 = vld [vmem:[#allocation4 + $0xc] sm:$0xf]
    %v250 = vld [vmem:[#allocation4 + $0x10] sm:$0xf]
    %v251 = vld [vmem:[#allocation4 + $0x14] sm:$0xf]
    %v252 = vld [vmem:[#allocation4 + $0x18] sm:$0xf]
    %v253 = vld [vmem:[#allocation4 + $0x1c] sm:$0xf]
    %v254 = vld [vmem:[#allocation4 + $0x20] sm:$0xf]
    %v255 = vld [vmem:[#allocation4 + $0x24] sm:$0xf]
    %v256 = vld [vmem:[#allocation4 + $0x28] sm:$0xf]
    %v257 = vld [vmem:[#allocation4 + $0x2c] sm:$0xf]
    %v258 = vld [vmem:[#allocation4 + $0x30] sm:$0xf]
    %v259 = vld [vmem:[#allocation4 + $0x34] sm:$0xf]
    %v260 = vld [vmem:[#allocation4 + $0x38] sm:$0xf]
    %v261 = vld [vmem:[#allocation4 + $0x3c] sm:$0xf]
    %v262 = vld [vmem:[%s6] sm:$0x1]
    %v264 = vlaneseq
    %v265 = vshrl.u32 %v264, 7
    %v266 = vsub.s32 0, %v265
    %v267 = vrot.slane %v262, %v266
    %v285 = vunpack.c.l.b16 %v246
    %v286 = vunpack.c.l.b16 %v247
    %v287 = vunpack.c.l.b16 %v248
    %v288 = vunpack.c.l.b16 %v249
    %v289 = vunpack.c.l.b16 %v250
    %v290 = vunpack.c.l.b16 %v251
    %v291 = vunpack.c.l.b16 %v252
    %v292 = vunpack.c.l.b16 %v253
    %v293 = vunpack.c.l.b16 %v254
    %v294 = vunpack.c.l.b16 %v255
    %v295 = vunpack.c.l.b16 %v256
    %v296 = vunpack.c.l.b16 %v257
    %v297 = vunpack.c.l.b16 %v258
    %v298 = vunpack.c.l.b16 %v259
    %v299 = vunpack.c.l.b16 %v260
    %v300 = vunpack.c.l.b16 %v261
    %v301 = vpack.c.b16 %v286, %v285
    %v302 = vpack.c.b16 %v288, %v287
    %v303 = vpack.c.b16 %v290, %v289
    %v304 = vpack.c.b16 %v292, %v291
    %v305 = vpack.c.b16 %v294, %v293
    %v306 = vpack.c.b16 %v296, %v295
    %v307 = vpack.c.b16 %v298, %v297
    %v308 = vpack.c.b16 %v300, %v299
    %317 = vmatprep.subr.bf16.mxu0 0
    %318 = vmatpush1.bf16.msra.mxu0 %v308
    %319 = vmatprep.subr.bf16.mxu0 0
    %320 = vmatpush1.bf16.msra.mxu0 %v307
    %321 = vmatprep.subr.bf16.mxu0 0
    %322 = vmatpush1.bf16.msra.mxu0 %v306
    %323 = vmatprep.subr.bf16.mxu0 0
    %324 = vmatpush1.bf16.msra.mxu0 %v305
    %325 = vmatprep.subr.bf16.mxu0 0
    %326 = vmatpush1.bf16.msra.mxu0 %v304
    %327 = vmatprep.subr.bf16.mxu0 0
    %328 = vmatpush1.bf16.msra.mxu0 %v303
    %329 = vmatprep.subr.bf16.mxu0 0
    %330 = vmatpush1.bf16.msra.mxu0 %v302
    %331 = vmatprep.subr.bf16.mxu0 0
    %332 = vmatpush1.bf16.msra.mxu0 %v301
    %333 = vmatprep.subr.bf16.mxu0 0
    %334 = vmatpush2.bf16.msra.mxu0 0
    %335 = vmatprep.subr.bf16.mxu0 0
    %336 = vmatpush2.bf16.msra.mxu0 0
    %337 = vmatprep.subr.bf16.mxu0 0
    %338 = vmatpush2.bf16.msra.mxu0 0
    %339 = vmatprep.subr.bf16.mxu0 0
    %340 = vmatpush2.bf16.msra.mxu0 0
    %341 = vmatprep.subr.bf16.mxu0 0
    %342 = vmatpush2.bf16.msra.mxu0 0
    %343 = vmatprep.subr.bf16.mxu0 0
    %344 = vmatpush2.bf16.msra.mxu0 0
    %345 = vmatprep.subr.bf16.mxu0 0
    %346 = vmatpush2.bf16.msra.mxu0 0
    %347 = vmatprep.subr.bf16.mxu0 0
    %348 = vmatpush2.bf16.msra.mxu0 0
    %349 = vmatprep.mubr.bf16.mxu0 0
    %350 = vmatmul.mubr.bf16.gmra.mxu0 %v245
    %v351 = vpop.f32.mrf.mxu0
    %v352 = vadd.f32 %v267, %v351
    %v353 = vpop.f32.mrf.mxu0
    %v354 = vpop.f32.mrf.mxu0
    %v355 = vadd.f32 %v267, %v354
    %v356 = vpop.f32.mrf.mxu0
    %357 = vdwg.mxu0
    %358 = vst [vmem:[%s7] sm:$0xff] %v352
    %359 = vst [vmem:[%s7 + $0x8] sm:$0xff] %v355
    // Predicated region
    $region38: #{_encoder_forward_impl.1} parent=1 // pred_check
      _
    $region39: #{_encoder_forward_impl.1} parent=1 // pred_check_branch
      %361 = sbr.rel (0) target = $region41
    $region40: #{_encoder_forward_impl.1} parent=1 // pred_region
      _
    $region41: #{_encoder_forward_impl.1} parent=1 // pred_fallthru
      _
    // Predicated region
    $region42: #{_encoder_forward_impl.1} parent=1 // pred_check
      _
    $region43: #{_encoder_forward_impl.1} parent=1 // pred_check_branch
      %363 = sbr.rel (0) target = $region45
    $region44: #{_encoder_forward_impl.1} parent=1 // pred_region
      _
    $region45: #{_encoder_forward_impl.1} parent=1 // pred_fallthru
      _
    %364 = vsyncpa [#allocation3], 1
    %365 = vsyncpa [#allocation5], 1

// kernel: _encoder_forward_impl.1
$region0: #{_encoder_forward_impl.1}
  #allocation0 [shape = 'u32[]', space=smem, size = 0x4, offset = 0x4, fixed_abs, tag = 'smem constant byte address 0x4 - core index']
  #allocation1 [shape = 'u32[144,128]{1,0:T(1,128)}', space=vmem, size = 0x12000, scoped, tag = 'internal scratch']
  %s0 = inlined_call_operand.vmem [shape: bf16[16,32], index: 0, kind: input, shape index: {}]
  %s1 = inlined_call_operand.vmem [shape: bf16[32,128], index: 1, kind: input, shape index: {}]
  %s2 = inlined_call_operand.vmem [shape: f32[1,128], index: 2, kind: input, shape index: {}]
  %s3 = inlined_call_operand.hbm [shape: bf16[128,128], index: 3, kind: input, shape index: {}]
  %s4 = inlined_call_operand.vmem [shape: f32[1,128], index: 4, kind: input, shape index: {}]
  %s5 = inlined_call_operand.hbm [shape: bf16[128,128], index: 5, kind: input, shape index: {}]
  %s6 = inlined_call_operand.vmem [shape: f32[1,128], index: 6, kind: input, shape index: {}]
  %s7 = inlined_call_operand.vmem [shape: f32[16,128], index: 7, kind: output, shape index: {}]
  %s8 = sld [smem:[#allocation0]]
  $region46: #{_encoder_forward_impl.1} parent=0
    _
  %s10 = ssub.s32 1, %s8
  %s11 = scalar_select 0, %s10, %s8
  $region1: #{_encoder_forward_impl.1} parent=0
    #allocation2 [shape = 'u8[32768]{0}', space=vmem, size = 0x8000, scoped, tag = 'input window, operand 3, single buffered']
    #allocation3 [shape = 's32[1]{0}', space=sflag, size = 0x4, scoped, tag = 'scoped memory for _encoder_forward_impl.1']
    #allocation4 [shape = 'u8[32768]{0}', space=vmem, size = 0x8000, scoped, tag = 'input window, operand 5, single buffered']
    #allocation5 [shape = 's32[1]{0}', space=sflag, size = 0x4, scoped, tag = 'scoped memory for _encoder_forward_impl.1']
    %12 = vsyncpa [#allocation3], 0
    %13 = vsyncpa [#allocation5], 0
    // Predicated region
    $region2: #{_encoder_forward_impl.1} parent=1 // pred_check
      _
    $region3: #{_encoder_forward_impl.1} parent=1 // pred_check_branch
      %15 = sbr.rel (0) target = $region5
    $region4: #{_encoder_forward_impl.1} parent=1 // pred_region
      _
    $region5: #{_encoder_forward_impl.1} parent=1 // pred_fallthru
      _
    // Predicated region
    $region6: #{_encoder_forward_impl.1} parent=1 // pred_check
      _
    $region7: #{_encoder_forward_impl.1} parent=1 // pred_check_branch
      %17 = sbr.rel (0) target = $region9
    $region8: #{_encoder_forward_impl.1} parent=1 // pred_region
      _
    $region9: #{_encoder_forward_impl.1} parent=1 // pred_fallthru
      _
    // Predicated region
    $region10: #{_encoder_forward_impl.1} parent=1 // pred_check
      _
    $region11: #{_encoder_forward_impl.1} parent=1 // pred_check_branch
      %19 = sbr.rel (0) target = $region13
    $region12: #{_encoder_forward_impl.1} parent=1 // pred_region
      _
    $region13: #{_encoder_forward_impl.1} parent=1 // pred_fallthru
      _
    // Predicated region
    $region14: #{_encoder_forward_impl.1} parent=1 // pred_check
      _
    $region15: #{_encoder_forward_impl.1} parent=1 // pred_check_branch
      %21 = sbr.rel (0) target = $region17
    $region16: #{_encoder_forward_impl.1} parent=1 // pred_region
      %s23 = ssub.s32 1024, 1024
      %24 = vsyncadd [#allocation3], %s23
      %s25 = sshll.u32 [#allocation2], 4
      %s26 = int_to_ptr.vmem [resolvable:$true] %s25
      %31 = dma.hbm_to_vmem [thread:$0]  %s3, 1024, %s26, [#allocation3], 64, 64, 4
    $region17: #{_encoder_forward_impl.1} parent=1 // pred_fallthru
      _
    // Predicated region
    $region18: #{_encoder_forward_impl.1} parent=1 // pred_check
      _
    $region19: #{_encoder_forward_impl.1} parent=1 // pred_check_branch
      %33 = sbr.rel (0) target = $region21
    $region20: #{_encoder_forward_impl.1} parent=1 // pred_region
      _
    $region21: #{_encoder_forward_impl.1} parent=1 // pred_fallthru
      _
    // Predicated region
    $region22: #{_encoder_forward_impl.1} parent=1 // pred_check
      _
    $region23: #{_encoder_forward_impl.1} parent=1 // pred_check_branch
      %35 = sbr.rel (0) target = $region25
    $region24: #{_encoder_forward_impl.1} parent=1 // pred_region
      %s37 = ssub.s32 1024, 1024
      %38 = vsyncadd [#allocation5], %s37
      %s39 = sshll.u32 [#allocation4], 4
      %s40 = int_to_ptr.vmem [resolvable:$true] %s39
      %45 = dma.hbm_to_vmem [thread:$0]  %s5, 1024, %s40, [#allocation5], 64, 64, 4
    $region25: #{_encoder_forward_impl.1} parent=1 // pred_fallthru
      _
    // Predicated region
    $region26: #{_encoder_forward_impl.1} parent=1 // pred_check
      _
    $region27: #{_encoder_forward_impl.1} parent=1 // pred_check_branch
      %47 = sbr.rel (0) target = $region29
    $region28: #{_encoder_forward_impl.1} parent=1 // pred_region
      _
    $region29: #{_encoder_forward_impl.1} parent=1 // pred_fallthru
      _
    // Predicated region
    $region30: #{_encoder_forward_impl.1} parent=1 // pred_check
      _
    $region31: #{_encoder_forward_impl.1} parent=1 // pred_check_branch
      %49 = sbr.rel (0) target = $region33
    $region32: #{_encoder_forward_impl.1} parent=1 // pred_region
      %50 = dma.done [#allocation3], 1024
    $region33: #{_encoder_forward_impl.1} parent=1 // pred_fallthru
      _
    // Predicated region
    $region34: #{_encoder_forward_impl.1} parent=1 // pred_check
      _
    $region35: #{_encoder_forward_impl.1} parent=1 // pred_check_branch
      %52 = sbr.rel (0) target = $region37
    $region36: #{_encoder_forward_impl.1} parent=1 // pred_region
      %53 = dma.done [#allocation5], 1024
    $region37: #{_encoder_forward_impl.1} parent=1 // pred_fallthru
      _
    %v55 = vld [vmem:[%s0] sm:$0xf]
    %v56 = vld [vmem:[%s0 + $0x4] sm:$0xf]
    %v57 = vld [vmem:[%s1] sm:$0xf]
    %v58 = vld [vmem:[%s1 + $0x4] sm:$0xf]
    %v59 = vld [vmem:[%s1 + $0x8] sm:$0xf]
    %v60 = vld [vmem:[%s1 + $0xc] sm:$0xf]
    %v61 = vld [vmem:[%s2] sm:$0x1]
    %v63 = vlaneseq
    %v64 = vshrl.u32 %v63, 7
    %v65 = vsub.s32 0, %v64
    %v66 = vrot.slane %v61, %v65
    %v70 = vunpack.c.l.b16 %v55
    %v71 = vunpack.c.l.b16 %v56
    %v72 = vpack.c.b16 %v71, %v70
    %v77 = vunpack.c.l.b16 %v57
    %v78 = vunpack.c.l.b16 %v58
    %v79 = vunpack.c.l.b16 %v59
    %v80 = vunpack.c.l.b16 %v60
    %v81 = vpack.c.b16 %v78, %v77
    %v82 = vpack.c.b16 %v80, %v79
    %vm85 = vcmask 261120
    %v87 = vsel %vm85, %v72, 0
    %89 = vmatprep.subr.bf16.mxu0 0
    %90 = vmatpush1.bf16.msra.mxu0 0
    %91 = vmatprep.subr.bf16.mxu0 0
    %92 = vmatpush1.bf16.msra.mxu0 0
    %93 = vmatprep.subr.bf16.mxu0 0
    %94 = vmatpush1.bf16.msra.mxu0 0
    %95 = vmatprep.subr.bf16.mxu0 0
    %96 = vmatpush1.bf16.msra.mxu0 0
    %97 = vmatprep.subr.bf16.mxu0 0
    %98 = vmatpush1.bf16.msra.mxu0 0
    %99 = vmatprep.subr.bf16.mxu0 0
    %100 = vmatpush1.bf16.msra.mxu0 0
    %101 = vmatprep.subr.bf16.mxu0 0
    %102 = vmatpush1.bf16.msra.mxu0 %v82
    %103 = vmatprep.subr.bf16.mxu0 0
    %104 = vmatpush1.bf16.msra.mxu0 %v81
    %105 = vmatprep.subr.bf16.mxu0 0
    %106 = vmatpush2.bf16.msra.mxu0 0
    %107 = vmatprep.subr.bf16.mxu0 0
    %108 = vmatpush2.bf16.msra.mxu0 0
    %109 = vmatprep.subr.bf16.mxu0 0
    %110 = vmatpush2.bf16.msra.mxu0 0
    %111 = vmatprep.subr.bf16.mxu0 0
    %112 = vmatpush2.bf16.msra.mxu0 0
    %113 = vmatprep.subr.bf16.mxu0 0
    %114 = vmatpush2.bf16.msra.mxu0 0
    %115 = vmatprep.subr.bf16.mxu0 0
    %116 = vmatpush2.bf16.msra.mxu0 0
    %117 = vmatprep.subr.bf16.mxu0 0
    %118 = vmatpush2.bf16.msra.mxu0 0
    %119 = vmatprep.subr.bf16.mxu0 0
    %120 = vmatpush2.bf16.msra.mxu0 0
    %121 = vmatprep.mubr.bf16.mxu0 0
    %122 = vmatmul.mubr.bf16.gmra.mxu0 %v87
    %v123 = vpop.f32.mrf.mxu0
    %v124 = vadd.f32 %v66, %v123
    %v125 = vpop.f32.mrf.mxu0
    %v126 = vpop.f32.mrf.mxu0
    %v127 = vadd.f32 %v66, %v126
    %v128 = vpop.f32.mrf.mxu0
    %129 = vdwg.mxu0
    %v130 = vpack.c.bf16 %v127, %v124
    %v131 = vmax.bf16 %v130, 0
    %v132 = vld [vmem:[#allocation2] sm:$0xf]
    %v133 = vld [vmem:[#allocation2 + $0x4] sm:$0xf]
    %v134 = vld [vmem:[#allocation2 + $0x8] sm:$0xf]
    %v135 = vld [vmem:[#allocation2 + $0xc] sm:$0xf]
    %v136 = vld [vmem:[#allocation2 + $0x10] sm:$0xf]
    %v137 = vld [vmem:[#allocation2 + $0x14] sm:$0xf]
    %v138 = vld [vmem:[#allocation2 + $0x18] sm:$0xf]
    %v139 = vld [vmem:[#allocation2 + $0x1c] sm:$0xf]
    %v140 = vld [vmem:[#allocation2 + $0x20] sm:$0xf]
    %v141 = vld [vmem:[#allocation2 + $0x24] sm:$0xf]
    %v142 = vld [vmem:[#allocation2 + $0x28] sm:$0xf]
    %v143 = vld [vmem:[#allocation2 + $0x2c] sm:$0xf]
    %v144 = vld [vmem:[#allocation2 + $0x30] sm:$0xf]
    %v145 = vld [vmem:[#allocation2 + $0x34] sm:$0xf]
    %v146 = vld [vmem:[#allocation2 + $0x38] sm:$0xf]
    %v147 = vld [vmem:[#allocation2 + $0x3c] sm:$0xf]
    %v148 = vld [vmem:[%s4] sm:$0x1]
    %v150 = vlaneseq
    %v151 = vshrl.u32 %v150, 7
    %v152 = vsub.s32 0, %v151
    %v153 = vrot.slane %v148, %v152
    %v171 = vunpack.c.l.b16 %v132
    %v172 = vunpack.c.l.b16 %v133
    %v173 = vunpack.c.l.b16 %v134
    %v174 = vunpack.c.l.b16 %v135
    %v175 = vunpack.c.l.b16 %v136
    %v176 = vunpack.c.l.b16 %v137
    %v177 = vunpack.c.l.b16 %v138
    %v178 = vunpack.c.l.b16 %v139
    %v179 = vunpack.c.l.b16 %v140
    %v180 = vunpack.c.l.b16 %v141
    %v181 = vunpack.c.l.b16 %v142
    %v182 = vunpack.c.l.b16 %v143
    %v183 = vunpack.c.l.b16 %v144
    %v184 = vunpack.c.l.b16 %v145
    %v185 = vunpack.c.l.b16 %v146
    %v186 = vunpack.c.l.b16 %v147
    %v187 = vpack.c.b16 %v172, %v171
    %v188 = vpack.c.b16 %v174, %v173
    %v189 = vpack.c.b16 %v176, %v175
    %v190 = vpack.c.b16 %v178, %v177
    %v191 = vpack.c.b16 %v180, %v179
    %v192 = vpack.c.b16 %v182, %v181
    %v193 = vpack.c.b16 %v184, %v183
    %v194 = vpack.c.b16 %v186, %v185
    %203 = vmatprep.subr.bf16.mxu0 0
    %204 = vmatpush1.bf16.msra.mxu0 %v194
    %205 = vmatprep.subr.bf16.mxu0 0
    %206 = vmatpush1.bf16.msra.mxu0 %v193
    %207 = vmatprep.subr.bf16.mxu0 0
    %208 = vmatpush1.bf16.msra.mxu0 %v192
    %209 = vmatprep.subr.bf16.mxu0 0
    %210 = vmatpush1.bf16.msra.mxu0 %v191
    %211 = vmatprep.subr.bf16.mxu0 0
    %212 = vmatpush1.bf16.msra.mxu0 %v190
    %213 = vmatprep.subr.bf16.mxu0 0
    %214 = vmatpush1.bf16.msra.mxu0 %v189
    %215 = vmatprep.subr.bf16.mxu0 0
    %216 = vmatpush1.bf16.msra.mxu0 %v188
    %217 = vmatprep.subr.bf16.mxu0 0
    %218 = vmatpush1.bf16.msra.mxu0 %v187
    %219 = vmatprep.subr.bf16.mxu0 0
    %220 = vmatpush2.bf16.msra.mxu0 0
    %221 = vmatprep.subr.bf16.mxu0 0
    %222 = vmatpush2.bf16.msra.mxu0 0
    %223 = vmatprep.subr.bf16.mxu0 0
    %224 = vmatpush2.bf16.msra.mxu0 0
    %225 = vmatprep.subr.bf16.mxu0 0
    %226 = vmatpush2.bf16.msra.mxu0 0
    %227 = vmatprep.subr.bf16.mxu0 0
    %228 = vmatpush2.bf16.msra.mxu0 0
    %229 = vmatprep.subr.bf16.mxu0 0
    %230 = vmatpush2.bf16.msra.mxu0 0
    %231 = vmatprep.subr.bf16.mxu0 0
    %232 = vmatpush2.bf16.msra.mxu0 0
    %233 = vmatprep.subr.bf16.mxu0 0
    %234 = vmatpush2.bf16.msra.mxu0 0
    %235 = vmatprep.mubr.bf16.mxu0 0
    %236 = vmatmul.mubr.bf16.gmra.mxu0 %v131
    %v237 = vpop.f32.mrf.mxu0
    %v238 = vadd.f32 %v153, %v237
    %v239 = vpop.f32.mrf.mxu0
    %v240 = vpop.f32.mrf.mxu0
    %v241 = vadd.f32 %v153, %v240
    %v242 = vpop.f32.mrf.mxu0
    %243 = vdwg.mxu0
    %v244 = vpack.c.bf16 %v241, %v238
    %v245 = vmax.bf16 %v244, 0
    %v246 = vld [vmem:[#allocation4] sm:$0xf]
    %v247 = vld [vmem:[#allocation4 + $0x4] sm:$0xf]
    %v248 = vld [vmem:[#allocation4 + $0x8] sm:$0xf]
    %v249 = vld [vmem:[#allocation4 + $0xc] sm:$0xf]
    %v250 = vld [vmem:[#allocation4 + $0x10] sm:$0xf]
    %v251 = vld [vmem:[#allocation4 + $0x14] sm:$0xf]
    %v252 = vld [vmem:[#allocation4 + $0x18] sm:$0xf]
    %v253 = vld [vmem:[#allocation4 + $0x1c] sm:$0xf]
    %v254 = vld [vmem:[#allocation4 + $0x20] sm:$0xf]
    %v255 = vld [vmem:[#allocation4 + $0x24] sm:$0xf]
    %v256 = vld [vmem:[#allocation4 + $0x28] sm:$0xf]
    %v257 = vld [vmem:[#allocation4 + $0x2c] sm:$0xf]
    %v258 = vld [vmem:[#allocation4 + $0x30] sm:$0xf]
    %v259 = vld [vmem:[#allocation4 + $0x34] sm:$0xf]
    %v260 = vld [vmem:[#allocation4 + $0x38] sm:$0xf]
    %v261 = vld [vmem:[#allocation4 + $0x3c] sm:$0xf]
    %v262 = vld [vmem:[%s6] sm:$0x1]
    %v264 = vlaneseq
    %v265 = vshrl.u32 %v264, 7
    %v266 = vsub.s32 0, %v265
    %v267 = vrot.slane %v262, %v266
    %v285 = vunpack.c.l.b16 %v246
    %v286 = vunpack.c.l.b16 %v247
    %v287 = vunpack.c.l.b16 %v248
    %v288 = vunpack.c.l.b16 %v249
    %v289 = vunpack.c.l.b16 %v250
    %v290 = vunpack.c.l.b16 %v251
    %v291 = vunpack.c.l.b16 %v252
    %v292 = vunpack.c.l.b16 %v253
    %v293 = vunpack.c.l.b16 %v254
    %v294 = vunpack.c.l.b16 %v255
    %v295 = vunpack.c.l.b16 %v256
    %v296 = vunpack.c.l.b16 %v257
    %v297 = vunpack.c.l.b16 %v258
    %v298 = vunpack.c.l.b16 %v259
    %v299 = vunpack.c.l.b16 %v260
    %v300 = vunpack.c.l.b16 %v261
    %v301 = vpack.c.b16 %v286, %v285
    %v302 = vpack.c.b16 %v288, %v287
    %v303 = vpack.c.b16 %v290, %v289
    %v304 = vpack.c.b16 %v292, %v291
    %v305 = vpack.c.b16 %v294, %v293
    %v306 = vpack.c.b16 %v296, %v295
    %v307 = vpack.c.b16 %v298, %v297
    %v308 = vpack.c.b16 %v300, %v299
    %317 = vmatprep.subr.bf16.mxu0 0
    %318 = vmatpush1.bf16.msra.mxu0 %v308
    %319 = vmatprep.subr.bf16.mxu0 0
    %320 = vmatpush1.bf16.msra.mxu0 %v307
    %321 = vmatprep.subr.bf16.mxu0 0
    %322 = vmatpush1.bf16.msra.mxu0 %v306
    %323 = vmatprep.subr.bf16.mxu0 0
    %324 = vmatpush1.bf16.msra.mxu0 %v305
    %325 = vmatprep.subr.bf16.mxu0 0
    %326 = vmatpush1.bf16.msra.mxu0 %v304
    %327 = vmatprep.subr.bf16.mxu0 0
    %328 = vmatpush1.bf16.msra.mxu0 %v303
    %329 = vmatprep.subr.bf16.mxu0 0
    %330 = vmatpush1.bf16.msra.mxu0 %v302
    %331 = vmatprep.subr.bf16.mxu0 0
    %332 = vmatpush1.bf16.msra.mxu0 %v301
    %333 = vmatprep.subr.bf16.mxu0 0
    %334 = vmatpush2.bf16.msra.mxu0 0
    %335 = vmatprep.subr.bf16.mxu0 0
    %336 = vmatpush2.bf16.msra.mxu0 0
    %337 = vmatprep.subr.bf16.mxu0 0
    %338 = vmatpush2.bf16.msra.mxu0 0
    %339 = vmatprep.subr.bf16.mxu0 0
    %340 = vmatpush2.bf16.msra.mxu0 0
    %341 = vmatprep.subr.bf16.mxu0 0
    %342 = vmatpush2.bf16.msra.mxu0 0
    %343 = vmatprep.subr.bf16.mxu0 0
    %344 = vmatpush2.bf16.msra.mxu0 0
    %345 = vmatprep.subr.bf16.mxu0 0
    %346 = vmatpush2.bf16.msra.mxu0 0
    %347 = vmatprep.subr.bf16.mxu0 0
    %348 = vmatpush2.bf16.msra.mxu0 0
    %349 = vmatprep.mubr.bf16.mxu0 0
    %350 = vmatmul.mubr.bf16.gmra.mxu0 %v245
    %v351 = vpop.f32.mrf.mxu0
    %v352 = vadd.f32 %v267, %v351
    %v353 = vpop.f32.mrf.mxu0
    %v354 = vpop.f32.mrf.mxu0
    %v355 = vadd.f32 %v267, %v354
    %v356 = vpop.f32.mrf.mxu0
    %357 = vdwg.mxu0
    %358 = vst [vmem:[%s7] sm:$0xff] %v352
    %359 = vst [vmem:[%s7 + $0x8] sm:$0xff] %v355
    // Predicated region
    $region38: #{_encoder_forward_impl.1} parent=1 // pred_check
      _
    $region39: #{_encoder_forward_impl.1} parent=1 // pred_check_branch
      %361 = sbr.rel (0) target = $region41
    $region40: #{_encoder_forward_impl.1} parent=1 // pred_region
      _
    $region41: #{_encoder_forward_impl.1} parent=1 // pred_fallthru
      _
    // Predicated region
    $region42: #{_encoder_forward_impl.1} parent=1 // pred_check
      _
    $region43: #{_encoder_forward_impl.1} parent=1 // pred_check_branch
      %363 = sbr.rel (0) target = $region45
    $region44: #{_encoder_forward_impl.1} parent=1 // pred_region
      _
    $region45: #{_encoder_forward_impl.1} parent=1 // pred_fallthru
      _
    %364 = vsyncpa [#allocation3], 1
    %365 = vsyncpa [#allocation5], 1

</llo_original>
